<compile_context>
chip_gen: v6e
topology: v6e:2x2x1
jax: 0.10.0
libtpu: 0.0.40
codegen_flags: <defaults>
</compile_context>

<pallas_src>
import functools
import math

import jax
import jax.numpy as jnp
from jax.experimental import pallas as pl
from jax.experimental.pallas import tpu as pltpu

_MIB = 1024 * 1024


# ----------------------------------------------------------------------------
# "Module init": build the sinusoidal table exactly as the PyTorch __init__ does.
# ----------------------------------------------------------------------------
def make_positional_encoding_table(d_model, max_len=5000, dtype=jnp.float32):
    assert d_model % 2 == 0, "d_model must be even (same requirement as the PyTorch module)"
    position = jnp.arange(max_len, dtype=jnp.float32)[:, None]                   # (max_len, 1)
    div_term = jnp.exp(jnp.arange(0, d_model, 2, dtype=jnp.float32)
                       * (-math.log(10000.0) / d_model))                          # (d_model/2,)
    ang = position * div_term                                                     # (max_len, d_model/2)
    pe = jnp.zeros((max_len, d_model), jnp.float32)
    pe = pe.at[:, 0::2].set(jnp.sin(ang))
    pe = pe.at[:, 1::2].set(jnp.cos(ang))
    # PyTorch: pe.unsqueeze(0).transpose(0, 1)  -> (max_len, 1, d_model)
    return pe[:, None, :].astype(dtype)


# ----------------------------------------------------------------------------
# Kernels
# ----------------------------------------------------------------------------
def _pe_add_kernel_3d(x_ref, pe_ref, o_ref):
    # x: (bs, B, D), pe: (bs, 1, D) -> broadcast over the batch (sublane) axis.
    o_ref[...] = x_ref[...] + pe_ref[...]


def _pe_add_kernel_flat(x_ref, pe_ref, o_ref, *, reps):
    # x: (bs, B*D), pe: (bs, D). D is a multiple of 128 on this path, so jnp.tile
    # along the lane axis is whole-vreg copies and the store stays fully lane-dense.
    o_ref[...] = x_ref[...] + jnp.tile(pe_ref[...], (1, reps))


# ----------------------------------------------------------------------------
# Sizing helpers
# ----------------------------------------------------------------------------
def _round_up(x, m):
    return -(-x // m) * m


def _vmem_capacity_bytes():
    try:
        return int(pltpu.get_tpu_info().vmem_capacity_bytes)
    except Exception:
        return 64 * _MIB  # conservative: v7x has 64 MiB VMEM per TensorCore


def _choose_block_seq(S, x_row_bytes, pe_row_bytes, budget_bytes):
    """Largest seq-block that fits the pipelined VMEM budget, with >=2 grid blocks
    when the sequence is long enough (so v7x's second TensorCore engages)."""
    # per seq-row: x + out tiles (each double-buffered) + pe tile (double-buffered)
    per_row = 2 * (2 * x_row_bytes + pe_row_bytes)
    bs = max(1, budget_bytes // per_row)
    bs = min(bs, S)
    if bs >= 8:
        bs = (bs // 8) * 8
    if bs >= S and S >= 16:
        half = -(-S // 2)               # cdiv(S, 2)
        if half >= 8:
            half = _round_up(half, 8)
        bs = min(half, S)
    return max(bs, 1)


# ----------------------------------------------------------------------------
# Forward: x is (seq_len, batch, d_model), pe is (max_len, 1, d_model)
# ----------------------------------------------------------------------------
def positional_encoding_forward(x, pe, *, donate_x=False, force_pallas=False,
                                min_pallas_bytes=256 * 1024):
    S, B, D = x.shape
    assert pe.ndim == 3 and pe.shape[1] == 1 and pe.shape[2] == D
    assert S <= pe.shape[0], "sequence length exceeds max_len of the PE table"
    assert pe.dtype == x.dtype
    isz = jnp.dtype(x.dtype).itemsize

    # Tiny inputs: fixed pallas_call + per-grid-step overhead dominates KB-scale work;
    # let XLA fuse the broadcast-add with neighbouring ops instead.
    if not force_pallas and S * B * D * isz < min_pallas_bytes:
        return x + pe[:S]

    # VMEM budget / scoped limit: raise above the 16/32 MiB defaults (v5e/v6e) so
    # multi-MiB blocks fit, but stay well inside physical VMEM (64 MiB/TC on v7x).
    vmem_cap = _vmem_capacity_bytes()
    vmem_limit = int(min(vmem_cap * 3 // 4, 96 * _MIB))
    budget = vmem_limit - 4 * _MIB  # headroom for Mosaic internal scratch

    lane, sub = 128, 8
    # Flattened layout when batch is sublane-sparse but d_model is lane-aligned:
    # keeps every output store an unmasked full-lane row.
    use_flat = (D % lane == 0) and (B < sub)

    cost = pl.CostEstimate(
        flops=S * B * D,                                   # one add per element
        transcendentals=0,
        bytes_accessed=(2 * S * B * D + S * D) * isz,
    )
    compiler_params = pltpu.CompilerParams(
        dimension_semantics=("parallel",),                 # independent seq blocks
        vmem_limit_bytes=vmem_limit,
    )
    io_alias = {0: 0} if donate_x else {}

    if use_flat:
        BD = B * D
        x_row = BD * isz
        pe_row = _round_up(D, lane) * isz
        bs = _choose_block_seq(S, x_row, pe_row, budget)
        # second-minor dim of the flat block must be a multiple of 8 (or the full S)
        if bs % 8 != 0:
            bs = S if S < 8 else max(8, (bs // 8) * 8)
        grid = (pl.cdiv(S, bs),)

        x2 = x.reshape(S, BD)                    # free, contiguous reshape
        pe2 = pe.reshape(pe.shape[0], D)         # (max_len, D) view of the buffer
        kernel = functools.partial(_pe_add_kernel_flat, reps=B)
        out = pl.pallas_call(
            kernel,
            out_shape=jax.ShapeDtypeStruct((S, BD), x.dtype),
            grid=grid,
            in_specs=[
                pl.BlockSpec((bs, BD), lambda i: (i, 0)),
                # Only the first ~S rows of the 5000-row table are ever DMA'd.
                # A partial last block may read pe rows beyond S (still < max_len);
                # the corresponding output rows are masked, so this is benign.
                pl.BlockSpec((bs, D), lambda i: (i, 0)),
            ],
            out_specs=pl.BlockSpec((bs, BD), lambda i: (i, 0)),
            compiler_params=compiler_params,
            cost_estimate=cost,
            input_output_aliases=io_alias,
        )(x2, pe2)
        return out.reshape(S, B, D)

    # 3-D path (d_model not lane-aligned, or batch already sublane-dense).
    # The (bs, 1, D) pe tile pads its (1, D) slab to (8, round_up(D,128)) in VMEM;
    # that 8x padding is included in the per-row budget below.
    x_row = _round_up(B, sub) * _round_up(D, lane) * isz
    pe_row = sub * _round_up(D, lane) * isz
    bs = _choose_block_seq(S, x_row, pe_row, budget)
    grid = (pl.cdiv(S, bs),)

    return pl.pallas_call(
        _pe_add_kernel_3d,
        out_shape=jax.ShapeDtypeStruct((S, B, D), x.dtype),
        grid=grid,
        in_specs=[
            pl.BlockSpec((bs, B, D), lambda i: (i, 0, 0)),
            pl.BlockSpec((bs, 1, D), lambda i: (i, 0, 0)),
        ],
        out_specs=pl.BlockSpec((bs, B, D), lambda i: (i, 0, 0)),
        compiler_params=compiler_params,
        cost_estimate=cost,
        input_output_aliases=io_alias,
    )(x, pe)


# ----------------------------------------------------------------------------
if __name__ == "__main__":
    max_len = 5000
    key = jax.random.PRNGKey(0)
    k1, k2 = jax.random.split(key)

    # ---- Case 1: small shapes matching the module (3-D kernel path) ----
    S1, B1, D1 = 8, 2, 32
    x1 = jax.random.normal(k1, (S1, B1, D1), jnp.float32)
    pe1 = make_positional_encoding_table(D1, max_len=max_len)
    y1 = jax.block_until_ready(positional_encoding_forward(x1, pe1, force_pallas=True))
    ref1 = x1 + pe1[:S1]
    assert y1.shape == (S1, B1, D1)
    assert bool(jnp.all(jnp.isfinite(y1)))
    assert bool(jnp.allclose(y1, ref1, rtol=1e-6, atol=1e-6))

    # Default dispatch on a tiny input falls back to plain JAX -- same result.
    y1_auto = jax.block_until_ready(positional_encoding_forward(x1, pe1))
    assert bool(jnp.allclose(y1_auto, ref1, rtol=1e-6, atol=1e-6))

    # ---- Case 2: lane-aligned d_model, sublane-sparse batch (flattened kernel path) ----
    S2, B2, D2 = 64, 2, 128
    x2 = jax.random.normal(k2, (S2, B2, D2), jnp.float32)
    pe2 = make_positional_encoding_table(D2, max_len=max_len)
    y2 = jax.block_until_ready(positional_encoding_forward(x2, pe2, force_pallas=True))
    ref2 = x2 + pe2[:S2]
    assert bool(jnp.all(jnp.isfinite(y2)))
    assert bool(jnp.allclose(y2, ref2, rtol=1e-6, atol=1e-6))

    # ---- In-place variant (input_output_aliases) under jit donation ----
    fwd_inplace = jax.jit(
        lambda xx, pp: positional_encoding_forward(xx, pp, donate_x=True, force_pallas=True),
        donate_argnums=(0,),
    )
    y3 = jax.block_until_ready(fwd_inplace(jnp.array(x2), pe2))
    assert bool(jnp.allclose(y3, ref2, rtol=1e-6, atol=1e-6))

    print("KERNEL_OK")
</pallas_src>

<mosaic_0001>
module attributes {stable_mosaic.version = 11 : i64} {
  func.func @_pe_add_kernel_3d(%arg0: i32, %arg1: memref<8x2x32xf32, #tpu.memory_space<vmem>>, %arg2: memref<8x1x32xf32, #tpu.memory_space<vmem>>, %arg3: memref<8x2x32xf32, #tpu.memory_space<vmem>>) attributes {dimension_semantics = [#tpu.dimension_semantics<parallel>], iteration_bounds = array<i64: 1>, scalar_prefetch = 0 : i64, scratch_operands = 0 : i64, tpu.core_type = #tpu.core_type<tc>, window_params = [{transform_indices = @transform_0, window_bounds = array<i64: 8, 2, 32>}, {transform_indices = @transform_1, window_bounds = array<i64: 8, 1, 32>}, {transform_indices = @transform_2, window_bounds = array<i64: 8, 2, 32>}]} {
    %c0 = arith.constant 0 : index
    %c0_0 = arith.constant 0 : index
    %c0_1 = arith.constant 0 : index
    %0 = vector.load %arg1[%c0, %c0_0, %c0_1] : memref<8x2x32xf32, #tpu.memory_space<vmem>>, vector<8x2x32xf32>
    %c0_2 = arith.constant 0 : index
    %c0_3 = arith.constant 0 : index
    %c0_4 = arith.constant 0 : index
    %1 = vector.load %arg2[%c0_2, %c0_3, %c0_4] : memref<8x1x32xf32, #tpu.memory_space<vmem>>, vector<8x1x32xf32>
    %2 = vector.broadcast %1 : vector<8x1x32xf32> to vector<8x2x32xf32>
    %3 = arith.addf %0, %2 : vector<8x2x32xf32>
    %c0_5 = arith.constant 0 : index
    %c0_6 = arith.constant 0 : index
    %c0_7 = arith.constant 0 : index
    %4 = vector.load %arg3[%c0_5, %c0_6, %c0_7] : memref<8x2x32xf32, #tpu.memory_space<vmem>>, vector<8x2x32xf32>
    tpu.vector_store %arg3[%c0_5, %c0_6, %c0_7], %3 {strides = array<i32>} : memref<8x2x32xf32, #tpu.memory_space<vmem>>, vector<8x2x32xf32>,
    return
  }
  func.func @transform_0(%arg0: i32) -> (i32, i32, i32) {
    %c0_i32 = arith.constant 0 : i32
    %c0_i32_0 = arith.constant 0 : i32
    %c0_i32_1 = arith.constant 0 : i32
    return %arg0, %c0_i32, %c0_i32_0 : i32, i32, i32
  }
  func.func @transform_1(%arg0: i32) -> (i32, i32, i32) {
    %c0_i32 = arith.constant 0 : i32
    %c0_i32_0 = arith.constant 0 : i32
    %c0_i32_1 = arith.constant 0 : i32
    return %arg0, %c0_i32, %c0_i32_0 : i32, i32, i32
  }
  func.func @transform_2(%arg0: i32) -> (i32, i32, i32) {
    %c0_i32 = arith.constant 0 : i32
    %c0_i32_0 = arith.constant 0 : i32
    %c0_i32_1 = arith.constant 0 : i32
    return %arg0, %c0_i32, %c0_i32_0 : i32, i32, i32
  }
}

</mosaic_0001>

<llo_original>
// kernel: tpu_custom_call.1
$region0: #{tpu_custom_call.1}
  #allocation0 [shape = 'u32[]', space=smem, size = 0x4, offset = 0x4, fixed_abs, tag = 'smem constant byte address 0x4 - core index']
  #allocation1 [shape = 'u32[144,128]{1,0:T(1,128)}', space=vmem, size = 0x12000, scoped, tag = 'internal scratch']
  %s0 = inlined_call_operand.vmem [shape: f32[8,2,32], index: 0, kind: input, shape index: {}]
  %s1 = inlined_call_operand.vmem [shape: f32[5000,1,32], index: 1, kind: input, shape index: {}]
  %s2 = inlined_call_operand.hbm [shape: f32[8,2,32], index: 2, kind: output, shape index: {}]
  %s3 = sld [smem:[#allocation0]]
  $region18: #{tpu_custom_call.1} parent=0
    _
  %s5 = ssub.s32 1, %s3
  %s6 = scalar_select 0, %s5, %s3
  $region1: #{tpu_custom_call.1} parent=0
    #allocation2 [shape = 'u8[8192]{0}', space=vmem, size = 0x2000, scoped, tag = 'output window, operand 0, single buffered']
    #allocation3 [shape = 's32[1]{0}', space=sflag, size = 0x4, scoped, tag = 'scoped memory for tpu_custom_call.1']
    %7 = vsyncpa [#allocation3], 0
    // Predicated region
    $region2: #{tpu_custom_call.1} parent=1 // pred_check
      _
    $region3: #{tpu_custom_call.1} parent=1 // pred_check_branch
      %9 = sbr.rel (0) target = $region5
    $region4: #{tpu_custom_call.1} parent=1 // pred_region
      _
    $region5: #{tpu_custom_call.1} parent=1 // pred_fallthru
      _
    // Predicated region
    $region6: #{tpu_custom_call.1} parent=1 // pred_check
      _
    $region7: #{tpu_custom_call.1} parent=1 // pred_check_branch
      %11 = sbr.rel (0) target = $region9
    $region8: #{tpu_custom_call.1} parent=1 // pred_region
      _
    $region9: #{tpu_custom_call.1} parent=1 // pred_fallthru
      _
    %v12 = vld [vmem:[%s0] sm:$0x3]
    %v13 = vld [vmem:[%s0 + $0x2] sm:$0x3]
    %v14 = vld [vmem:[%s0 + $0x4] sm:$0x3]
    %v15 = vld [vmem:[%s0 + $0x6] sm:$0x3]
    %v16 = vld [vmem:[%s0 + $0x8] sm:$0x3]
    %v17 = vld [vmem:[%s0 + $0xa] sm:$0x3]
    %v18 = vld [vmem:[%s0 + $0xc] sm:$0x3]
    %v19 = vld [vmem:[%s0 + $0xe] sm:$0x3]
    %v20 = vld [vmem:[%s1] sm:$0x1]
    %v21 = vld [vmem:[%s1 + $0x1] sm:$0x1]
    %v22 = vld [vmem:[%s1 + $0x2] sm:$0x1]
    %v23 = vld [vmem:[%s1 + $0x3] sm:$0x1]
    %v24 = vld [vmem:[%s1 + $0x4] sm:$0x1]
    %v25 = vld [vmem:[%s1 + $0x5] sm:$0x1]
    %v26 = vld [vmem:[%s1 + $0x6] sm:$0x1]
    %v27 = vld [vmem:[%s1 + $0x7] sm:$0x1]
    %v36 = vlaneseq
    %v37 = vshrl.u32 %v36, 7
    %v38 = vsub.s32 0, %v37
    %v39 = vrot.slane %v20, %v38
    %v40 = vlaneseq
    %v41 = vshrl.u32 %v40, 7
    %v42 = vsub.s32 0, %v41
    %v43 = vrot.slane %v21, %v42
    %v44 = vlaneseq
    %v45 = vshrl.u32 %v44, 7
    %v46 = vsub.s32 0, %v45
    %v47 = vrot.slane %v22, %v46
    %v48 = vlaneseq
    %v49 = vshrl.u32 %v48, 7
    %v50 = vsub.s32 0, %v49
    %v51 = vrot.slane %v23, %v50
    %v52 = vlaneseq
    %v53 = vshrl.u32 %v52, 7
    %v54 = vsub.s32 0, %v53
    %v55 = vrot.slane %v24, %v54
    %v56 = vlaneseq
    %v57 = vshrl.u32 %v56, 7
    %v58 = vsub.s32 0, %v57
    %v59 = vrot.slane %v25, %v58
    %v60 = vlaneseq
    %v61 = vshrl.u32 %v60, 7
    %v62 = vsub.s32 0, %v61
    %v63 = vrot.slane %v26, %v62
    %v64 = vlaneseq
    %v65 = vshrl.u32 %v64, 7
    %v66 = vsub.s32 0, %v65
    %v67 = vrot.slane %v27, %v66
    %v76 = vadd.f32 %v12, %v39
    %v77 = vadd.f32 %v13, %v43
    %v78 = vadd.f32 %v14, %v47
    %v79 = vadd.f32 %v15, %v51
    %v80 = vadd.f32 %v16, %v55
    %v81 = vadd.f32 %v17, %v59
    %v82 = vadd.f32 %v18, %v63
    %v83 = vadd.f32 %v19, %v67
    %vm84 = vcmask 254976
    %85 = vst.msk [vmem:[#allocation2] sm:$0x3] %vm84, %v76
    %86 = vst.msk [vmem:[#allocation2 + $0x2] sm:$0x3] %vm84, %v77
    %87 = vst.msk [vmem:[#allocation2 + $0x4] sm:$0x3] %vm84, %v78
    %88 = vst.msk [vmem:[#allocation2 + $0x6] sm:$0x3] %vm84, %v79
    %89 = vst.msk [vmem:[#allocation2 + $0x8] sm:$0x3] %vm84, %v80
    %90 = vst.msk [vmem:[#allocation2 + $0xa] sm:$0x3] %vm84, %v81
    %91 = vst.msk [vmem:[#allocation2 + $0xc] sm:$0x3] %vm84, %v82
    %92 = vst.msk [vmem:[#allocation2 + $0xe] sm:$0x3] %vm84, %v83
    // Predicated region
    $region10: #{tpu_custom_call.1} parent=1 // pred_check
      _
    $region11: #{tpu_custom_call.1} parent=1 // pred_check_branch
      %94 = sbr.rel (0) target = $region13
    $region12: #{tpu_custom_call.1} parent=1 // pred_region
      %s96 = ssub.s32 256, 256
      %97 = vsyncadd [#allocation3], %s96
      %s98 = sshll.u32 [#allocation2], 4
      %s99 = int_to_ptr.vmem [resolvable:$true] %s98
      %104 = dma.vmem_to_hbm [thread:$0]  %s99, 256, %s2, [#allocation3], 32, 32, 2
    $region13: #{tpu_custom_call.1} parent=1 // pred_fallthru
      _
    // Predicated region
    $region14: #{tpu_custom_call.1} parent=1 // pred_check
      _
    $region15: #{tpu_custom_call.1} parent=1 // pred_check_branch
      %106 = sbr.rel (0) target = $region17
    $region16: #{tpu_custom_call.1} parent=1 // pred_region
      %107 = dma.done [#allocation3], 256
    $region17: #{tpu_custom_call.1} parent=1 // pred_fallthru
      _
    %108 = vsyncpa [#allocation3], 1

</llo_original>
